<compile_context>
chip_gen: v7x
topology: tpu7x:2x2x1
jax: 0.10.0
libtpu: 0.0.40
codegen_flags: <defaults>
</compile_context>

<pallas_src>
import numpy as np
import jax
import jax.numpy as jnp
from jax.experimental import pallas as pl
from jax.experimental.pallas import tpu as pltpu

L_MAX = 128        # max characters per sequence (lane width)
_ROW_PAD = 32      # sublane multiple for int8 (32, 128) tiles
TILE_B_MAX = 4096  # rows per grid step: int8 in+out, double-buffered => ~4 MiB
                   # VMEM, fits v5e/v6e/v7x scoped defaults with headroom while
                   # amortizing the ~0.35us/step grid overhead.

# Constant upper-triangular matrix for the MXU cumsum: cum = token_start @ TRI
# with TRI[k, j] = 1 iff k <= j (inclusive prefix sum along lanes).
_TRI_NP = np.triu(np.ones((L_MAX, L_MAX), dtype=np.float32))


def _tokenize_kernel(mask_ref, tri_ref, token_id_ref):
    ic = mask_ref[...].astype(jnp.int32)            # [TILE_B, 128] 0/1
    is_char = ic != 0

    # previous-position occupancy: roll right one lane, zero the wrapped col 0.
    # The column mask is a single (1, 128) vreg broadcast over sublanes.
    col = jax.lax.broadcasted_iota(jnp.int32, (1, L_MAX), 1)
    prev = pltpu.roll(ic, shift=1, axis=1) * (col != 0).astype(jnp.int32)

    # a token starts where a char position is not preceded by a char position
    token_start = jnp.logical_and(is_char, prev == 0).astype(jnp.bfloat16)

    # inclusive prefix sum along lanes via the otherwise-idle MXU
    cum = jnp.dot(token_start, tri_ref[...], preferred_element_type=jnp.float32)
    cum_i = cum.astype(jnp.int32)

    # token id per character (-1 for separators / padding), values in [-1, 63]
    token_id_ref[...] = jnp.where(is_char, cum_i - 1, -1).astype(jnp.int8)


def _tokenize_pallas(mask: jnp.ndarray, tri: jnp.ndarray) -> jnp.ndarray:
    """mask: [rows, L_MAX] int8 -> token_id [rows, L_MAX] int8 (-1 = not a token char)."""
    rows = mask.shape[0]
    tile_b = min(TILE_B_MAX, rows)
    assert rows % tile_b == 0 and tile_b % _ROW_PAD == 0
    grid = (rows // tile_b,)
    # TODO(synk): optionally sweep pipeline_mode=pl.Buffered(3) on the mask
    # BlockSpec for v7x once tiles are tiny int8 blocks (marginal).
    return pl.pallas_call(
        _tokenize_kernel,
        out_shape=jax.ShapeDtypeStruct((rows, L_MAX), jnp.int8),
        grid=grid,
        in_specs=[
            pl.BlockSpec((tile_b, L_MAX), lambda i: (i, 0)),
            pl.BlockSpec((L_MAX, L_MAX), lambda i: (0, 0)),  # resident constant
        ],
        out_specs=pl.BlockSpec((tile_b, L_MAX), lambda i: (i, 0)),
        compiler_params=pltpu.CompilerParams(
            dimension_semantics=("parallel",)),
    )(mask, tri)


_tokenize_jit = jax.jit(_tokenize_pallas)


def _encode_mask(stripped, rows):
    mask = np.zeros((rows, L_MAX), dtype=np.int8)
    for b, s in enumerate(stripped):
        for i, ch in enumerate(s):
            if ch != " ":
                mask[b, i] = 1
    return mask


def space_string_to_list_tokenize(v):
    """Mirrors SpaceStringToListTokenizer.forward semantics."""
    if isinstance(v, (jax.Array, np.ndarray)):
        raise ValueError(f"Unsupported input: {v}")
    is_str = isinstance(v, str)
    inputs = [v] if is_str else list(v)
    nb = len(inputs)

    # TODO(synk): sequences longer than L_MAX=128 characters are truncated here.
    stripped = [s.strip()[:L_MAX] for s in inputs]

    # pad the batch to the int8 sublane tile and to a multiple of the batch tile
    rows32 = max(_ROW_PAD, -(-nb // _ROW_PAD) * _ROW_PAD)
    tile_b = min(TILE_B_MAX, rows32)
    rows = -(-rows32 // tile_b) * tile_b

    mask = _encode_mask(stripped, rows)
    tri = jnp.asarray(_TRI_NP, dtype=jnp.bfloat16)
    token_id = np.asarray(
        jax.block_until_ready(_tokenize_jit(jnp.asarray(mask), tri)))

    # decode back into List[List[str]] (host glue)
    tokens = []
    for b, s in enumerate(stripped):
        row = token_id[b]
        n = int(row.max()) + 1          # inclusive scan is monotone
        seq_tokens = ["" for _ in range(n)]
        for i, ch in enumerate(s):
            tid = int(row[i])
            if tid >= 0:
                seq_tokens[tid] += ch
        tokens.append(seq_tokens)
    return tokens[0] if is_str else tokens


def _reference_tokenize(v):
    """Pure-Python reimplementation of the torch module (ground truth)."""
    is_str = isinstance(v, str)
    inputs = [v] if is_str else list(v)
    tokens = []
    for sequence in inputs:
        split_sequence = sequence.strip().split(" ")
        tokens.append([t for t in split_sequence if len(t) > 0])
    return tokens[0] if is_str else tokens


if __name__ == "__main__":
    # deterministic synthetic string inputs built from jax.random.PRNGKey(0)
    key = jax.random.PRNGKey(0)
    codes = np.asarray(jax.random.randint(key, (2, 40), 0, 6))  # 0 -> ' ', 1..5 -> 'a'..'e'
    strings = []
    for row in codes:
        s = "".join(" " if c == 0 else chr(ord("a") + int(c) - 1) for c in row)
        strings.append(s)

    # list input
    out_list = space_string_to_list_tokenize(strings)
    ref_list = _reference_tokenize(strings)
    assert out_list == ref_list, f"mismatch:\n{out_list}\nvs\n{ref_list}"

    # single string input
    out_str = space_string_to_list_tokenize(strings[0])
    ref_str = _reference_tokenize(strings[0])
    assert out_str == ref_str, f"mismatch:\n{out_str}\nvs\n{ref_str}"

    # edge cases: all-spaces, empty string, consecutive spaces, unicode, NUL
    edge = ["   ", "", "a  b   c", " hello world ", "héllo wörld", "a\x00b c"]
    assert space_string_to_list_tokenize(edge) == _reference_tokenize(edge)

    # batch larger than the 32-row sublane pad (exercises row padding)
    big = [strings[i % 2] for i in range(37)] + edge
    assert space_string_to_list_tokenize(big) == _reference_tokenize(big)

    jax.block_until_ready(_tokenize_jit(jnp.zeros((_ROW_PAD, L_MAX), jnp.int8),
                                        jnp.asarray(_TRI_NP, jnp.bfloat16)))
    print("KERNEL_OK")
</pallas_src>

<mosaic_0001>
module attributes {stable_mosaic.version = 11 : i64} {
  func.func @_tokenize_kernel(%arg0: i32, %arg1: memref<32x128xi8, #tpu.memory_space<vmem>>, %arg2: memref<128x128xbf16, #tpu.memory_space<vmem>>, %arg3: memref<32x128xi8, #tpu.memory_space<vmem>>) attributes {dimension_semantics = [#tpu.dimension_semantics<parallel>], iteration_bounds = array<i64: 1>, scalar_prefetch = 0 : i64, scratch_operands = 0 : i64, tpu.core_type = #tpu.core_type<tc>, window_params = [{transform_indices = @transform_0, window_bounds = array<i64: 32, 128>}, {pipeline_mode = #tpu.pipeline_mode<synchronous>, transform_indices = @transform_1, window_bounds = array<i64: 128, 128>}, {transform_indices = @transform_2, window_bounds = array<i64: 32, 128>}]} {
    %c0 = arith.constant 0 : index
    %c0_0 = arith.constant 0 : index
    %0 = vector.load %arg1[%c0, %c0_0] : memref<32x128xi8, #tpu.memory_space<vmem>>, vector<32x128xi8>
    %1 = arith.extsi %0 : vector<32x128xi8> to vector<32x128xi32>
    %c0_i32 = arith.constant 0 : i32
    %2 = vector.broadcast %c0_i32 : i32 to vector<32x128xi32>
    %3 = arith.cmpi ne, %1, %2 : vector<32x128xi32>
    %4 = tpu.iota {dimensions = array<i32: 1>} : vector<1x128xi32>
    %c1_i32 = arith.constant 1 : i32
    %5 = tpu.dynamic_rotate %1 by %c1_i32 dim 1 : vector<32x128xi32>, i32 -> vector<32x128xi32>
    %c0_i32_1 = arith.constant 0 : i32
    %6 = vector.broadcast %c0_i32_1 : i32 to vector<1x128xi32>
    %7 = arith.cmpi ne, %4, %6 : vector<1x128xi32>
    %8 = arith.extui %7 : vector<1x128xi1> to vector<1x128xi32>
    %9 = vector.broadcast %8 : vector<1x128xi32> to vector<32x128xi32>
    %10 = arith.muli %5, %9 : vector<32x128xi32>
    %c0_i32_2 = arith.constant 0 : i32
    %11 = vector.broadcast %c0_i32_2 : i32 to vector<32x128xi32>
    %12 = arith.cmpi eq, %10, %11 : vector<32x128xi32>
    %13 = arith.andi %3, %12 : vector<32x128xi1>
    %14 = arith.extui %13 : vector<32x128xi1> to vector<32x128xi32>
    %15 = arith.sitofp %14 : vector<32x128xi32> to vector<32x128xf32>
    %16 = arith.truncf %15 : vector<32x128xf32> to vector<32x128xbf16>
    %c0_3 = arith.constant 0 : index
    %c0_4 = arith.constant 0 : index
    %17 = vector.load %arg2[%c0_3, %c0_4] : memref<128x128xbf16, #tpu.memory_space<vmem>>, vector<128x128xbf16>
    %cst = arith.constant dense<0.000000e+00> : vector<32x128xf32>
    %18 = tpu.matmul %16, %17, %cst {dimension_numbers = #tpu.dot_dimension_numbers<[1], [0], [0], [1], [0, 0, 1, 1], [], []>} : vector<32x128xbf16>, vector<128x128xbf16>, vector<32x128xf32> -> vector<32x128xf32>
    %19 = arith.fptosi %18 : vector<32x128xf32> to vector<32x128xi32>
    %c1_i32_5 = arith.constant 1 : i32
    %20 = vector.broadcast %c1_i32_5 : i32 to vector<32x128xi32>
    %21 = arith.subi %19, %20 : vector<32x128xi32>
    %c-1_i32 = arith.constant -1 : i32
    %22 = vector.broadcast %c-1_i32 : i32 to vector<32x128xi32>
    %23 = arith.select %3, %21, %22 : vector<32x128xi1>, vector<32x128xi32>
    %24 = arith.trunci %23 : vector<32x128xi32> to vector<32x128xi8>
    %c0_6 = arith.constant 0 : index
    %c0_7 = arith.constant 0 : index
    %25 = vector.load %arg3[%c0_6, %c0_7] : memref<32x128xi8, #tpu.memory_space<vmem>>, vector<32x128xi8>
    tpu.vector_store %arg3[%c0_6, %c0_7], %24 {strides = array<i32>} : memref<32x128xi8, #tpu.memory_space<vmem>>, vector<32x128xi8>,
    return
  }
  func.func @transform_0(%arg0: i32) -> (i32, i32) {
    %c0_i32 = arith.constant 0 : i32
    %c0_i32_0 = arith.constant 0 : i32
    return %arg0, %c0_i32 : i32, i32
  }
  func.func @transform_1(%arg0: i32) -> (i32, i32) {
    %c0_i32 = arith.constant 0 : i32
    %c0_i32_0 = arith.constant 0 : i32
    %c0_i32_1 = arith.constant 0 : i32
    return %c0_i32, %c0_i32_0 : i32, i32
  }
  func.func @transform_2(%arg0: i32) -> (i32, i32) {
    %c0_i32 = arith.constant 0 : i32
    %c0_i32_0 = arith.constant 0 : i32
    return %arg0, %c0_i32 : i32, i32
  }
}

</mosaic_0001>

<llo_original>
// kernel: _tokenize_pallas.1
$region0: #{_tokenize_pallas.1}
  #allocation0 [shape = 'u32[]', space=smem, size = 0x4, offset = 0x4, fixed_abs, tag = 'smem constant byte address 0x4 - core index']
  #allocation1 [shape = 'u32[144,128]{1,0:T(1,128)}', space=vmem, size = 0x12000, scoped, tag = 'internal scratch']
  %s0 = inlined_call_operand.hbm [shape: s8[32,128], index: 0, kind: input, shape index: {}]
  %s1 = inlined_call_operand.hbm [shape: bf16[128,128], index: 1, kind: input, shape index: {}]
  %s2 = inlined_call_operand.hbm [shape: s8[32,128], index: 2, kind: output, shape index: {}]
  %s3 = sld [smem:[#allocation0]]
  $region26: #{_tokenize_pallas.1} parent=0
    _
  %s5 = ssub.s32 1, %s3
  %s6 = scalar_select 0, %s5, %s3
  $region1: #{_tokenize_pallas.1} parent=0
    #allocation2 [shape = 'u8[4096]{0}', space=vmem, size = 0x1000, scoped, tag = 'input window, operand 0, single buffered']
    #allocation3 [shape = 's32[1]{0}', space=sflag, size = 0x4, scoped, tag = 'scoped memory for _tokenize_pallas.1']
    #allocation4 [shape = 's32[1]{0}', space=sflag, size = 0x4, scoped, tag = 'scoped memory for _tokenize_pallas.1']
    #allocation5 [shape = 'u8[32768]{0}', space=vmem, size = 0x8000, scoped, tag = 'input window, operand 1, single buffered']
    #allocation6 [shape = 's32[1]{0}', space=sflag, size = 0x4, scoped, tag = 'scoped memory for _tokenize_pallas.1']
    #allocation7 [shape = 'u8[4096]{0}', space=vmem, size = 0x1000, scoped, tag = 'output window, operand 0, single buffered']
    %7 = vsyncpa [#allocation3], 0
    %8 = vsyncpa [#allocation6], 0
    %9 = vsyncpa [#allocation4], 0
    // Predicated region
    $region2: #{_tokenize_pallas.1} parent=1 // pred_check
      _
    $region3: #{_tokenize_pallas.1} parent=1 // pred_check_branch
      %11 = sbr.rel (0) target = $region5
    $region4: #{_tokenize_pallas.1} parent=1 // pred_region
      %s13 = ssub.s32 128, 128
      %14 = vsyncadd [#allocation3], %s13
      %s16 = sshll.u32 [#allocation2], 4
      %s17 = int_to_ptr.vmem [resolvable:$true] %s16
      %19 = dma.hbm_to_vmem [thread:$0]  %s0, 128, %s17, [#allocation3]
    $region5: #{_tokenize_pallas.1} parent=1 // pred_fallthru
      _
    // Predicated region
    $region6: #{_tokenize_pallas.1} parent=1 // pred_check
      _
    $region7: #{_tokenize_pallas.1} parent=1 // pred_check_branch
      %21 = sbr.rel (0) target = $region9
    $region8: #{_tokenize_pallas.1} parent=1 // pred_region
      %s23 = ssub.s32 1024, 1024
      %24 = vsyncadd [#allocation6], %s23
      %s25 = sshll.u32 [#allocation5], 4
      %s26 = int_to_ptr.vmem [resolvable:$true] %s25
      %31 = dma.hbm_to_vmem [thread:$0]  %s1, 1024, %s26, [#allocation6], 64, 64, 4
    $region9: #{_tokenize_pallas.1} parent=1 // pred_fallthru
      _
    // Predicated region
    $region10: #{_tokenize_pallas.1} parent=1 // pred_check
      _
    $region11: #{_tokenize_pallas.1} parent=1 // pred_check_branch
      %33 = sbr.rel (0) target = $region13
    $region12: #{_tokenize_pallas.1} parent=1 // pred_region
      %34 = dma.done [#allocation3], 128
    $region13: #{_tokenize_pallas.1} parent=1 // pred_fallthru
      _
    // Predicated region
    $region14: #{_tokenize_pallas.1} parent=1 // pred_check
      _
    $region15: #{_tokenize_pallas.1} parent=1 // pred_check_branch
      %36 = sbr.rel (0) target = $region17
    $region16: #{_tokenize_pallas.1} parent=1 // pred_region
      %37 = dma.done [#allocation6], 1024
    $region17: #{_tokenize_pallas.1} parent=1 // pred_fallthru
      _
    %v39 = vld [vmem:[#allocation2] sm:$0xff]
    %v40 = vunpack.c.0.s8 %v39
    %v41 = vunpack.c.1.s8 %v39
    %v42 = vunpack.c.2.s8 %v39
    %v43 = vunpack.c.3.s8 %v39
    %vm44 = vcmp.ne.s32.totalorder %v40, 0
    %vm45 = vcmp.ne.s32.totalorder %v41, 0
    %vm46 = vcmp.ne.s32.totalorder %v42, 0
    %vm47 = vcmp.ne.s32.totalorder %v43, 0
    %v48 = vlaneseq
    %v49 = vand.u32 %v48, 127
    %50 = vrot.lane.b32.xlu0 %v40, 1
    %v51 = vpop.permute.xlu0 %50
    %52 = vrot.lane.b32.xlu0 %v41, 1
    %v53 = vpop.permute.xlu0 %52
    %54 = vrot.lane.b32.xlu0 %v42, 1
    %v55 = vpop.permute.xlu0 %54
    %56 = vrot.lane.b32.xlu0 %v43, 1
    %v57 = vpop.permute.xlu0 %56
    %vm58 = vcmp.ne.s32.totalorder %v49, 0
    %v59 = vsel %vm58, 1, 0
    %v60 = vmul.u32 %v51, %v59
    %v61 = vmul.u32 %v53, %v59
    %v62 = vmul.u32 %v55, %v59
    %v63 = vmul.u32 %v57, %v59
    %vm64 = vcmp.eq.s32.totalorder %v60, 0
    %vm65 = vcmp.eq.s32.totalorder %v61, 0
    %vm66 = vcmp.eq.s32.totalorder %v62, 0
    %vm67 = vcmp.eq.s32.totalorder %v63, 0
    %vm68 = vmand %vm44, %vm64
    %vm69 = vmand %vm45, %vm65
    %vm70 = vmand %vm46, %vm66
    %vm71 = vmand %vm47, %vm67
    %v72 = vsel %vm68, 1, 0
    %v73 = vsel %vm69, 1, 0
    %v74 = vsel %vm70, 1, 0
    %v75 = vsel %vm71, 1, 0
    %v76 = vcvt.s32.f32 %v72
    %v77 = vcvt.s32.f32 %v73
    %v78 = vcvt.s32.f32 %v74
    %v79 = vcvt.s32.f32 %v75
    %v80 = vpack.c.bf16 %v77, %v76
    %v81 = vpack.c.bf16 %v79, %v78
    %v82 = vld [vmem:[#allocation5] sm:$0xf]
    %v83 = vld [vmem:[#allocation5 + $0x4] sm:$0xf]
    %v84 = vld [vmem:[#allocation5 + $0x8] sm:$0xf]
    %v85 = vld [vmem:[#allocation5 + $0xc] sm:$0xf]
    %v86 = vld [vmem:[#allocation5 + $0x10] sm:$0xf]
    %v87 = vld [vmem:[#allocation5 + $0x14] sm:$0xf]
    %v88 = vld [vmem:[#allocation5 + $0x18] sm:$0xf]
    %v89 = vld [vmem:[#allocation5 + $0x1c] sm:$0xf]
    %v90 = vld [vmem:[#allocation5 + $0x20] sm:$0xf]
    %v91 = vld [vmem:[#allocation5 + $0x24] sm:$0xf]
    %v92 = vld [vmem:[#allocation5 + $0x28] sm:$0xf]
    %v93 = vld [vmem:[#allocation5 + $0x2c] sm:$0xf]
    %v94 = vld [vmem:[#allocation5 + $0x30] sm:$0xf]
    %v95 = vld [vmem:[#allocation5 + $0x34] sm:$0xf]
    %v96 = vld [vmem:[#allocation5 + $0x38] sm:$0xf]
    %v97 = vld [vmem:[#allocation5 + $0x3c] sm:$0xf]
    %v114 = vunpack.c.l.b16 %v82
    %v115 = vunpack.c.l.b16 %v83
    %v116 = vunpack.c.l.b16 %v84
    %v117 = vunpack.c.l.b16 %v85
    %v118 = vunpack.c.l.b16 %v86
    %v119 = vunpack.c.l.b16 %v87
    %v120 = vunpack.c.l.b16 %v88
    %v121 = vunpack.c.l.b16 %v89
    %v122 = vunpack.c.l.b16 %v90
    %v123 = vunpack.c.l.b16 %v91
    %v124 = vunpack.c.l.b16 %v92
    %v125 = vunpack.c.l.b16 %v93
    %v126 = vunpack.c.l.b16 %v94
    %v127 = vunpack.c.l.b16 %v95
    %v128 = vunpack.c.l.b16 %v96
    %v129 = vunpack.c.l.b16 %v97
    %v130 = vpack.c.b16 %v115, %v114
    %v131 = vpack.c.b16 %v117, %v116
    %v132 = vpack.c.b16 %v119, %v118
    %v133 = vpack.c.b16 %v121, %v120
    %v134 = vpack.c.b16 %v123, %v122
    %v135 = vpack.c.b16 %v125, %v124
    %v136 = vpack.c.b16 %v127, %v126
    %v137 = vpack.c.b16 %v129, %v128
    %146 = vmatprep.subr.bf16.mxu0 0
    %147 = vmatpush1.bf16.msra.mxu0 %v130
    %148 = vmatprep.subr.bf16.mxu0 0
    %149 = vmatpush1.bf16.msra.mxu0 %v131
    %150 = vmatprep.subr.bf16.mxu0 0
    %151 = vmatpush1.bf16.msra.mxu0 %v132
    %152 = vmatprep.subr.bf16.mxu0 0
    %153 = vmatpush1.bf16.msra.mxu0 %v133
    %154 = vmatprep.subr.bf16.mxu0 0
    %155 = vmatpush1.bf16.msra.mxu0 %v134
    %156 = vmatprep.subr.bf16.mxu0 0
    %157 = vmatpush1.bf16.msra.mxu0 %v135
    %158 = vmatprep.subr.bf16.mxu0 0
    %159 = vmatpush1.bf16.msra.mxu0 %v136
    %160 = vmatprep.subr.bf16.mxu0 0
    %161 = vmatpush1.bf16.msra.mxu0 %v137
    %162 = vmatprep.subr.bf16.mxu0 0
    %163 = vmatpush1.bf16.msra.mxu0 0
    %164 = vmatprep.subr.bf16.mxu0 0
    %165 = vmatpush1.bf16.msra.mxu0 0
    %166 = vmatprep.subr.bf16.mxu0 0
    %167 = vmatpush1.bf16.msra.mxu0 0
    %168 = vmatprep.subr.bf16.mxu0 0
    %169 = vmatpush1.bf16.msra.mxu0 0
    %170 = vmatprep.subr.bf16.mxu0 0
    %171 = vmatpush1.bf16.msra.mxu0 0
    %172 = vmatprep.subr.bf16.mxu0 0
    %173 = vmatpush1.bf16.msra.mxu0 0
    %174 = vmatprep.subr.bf16.mxu0 0
    %175 = vmatpush1.bf16.msra.mxu0 0
    %176 = vmatprep.subr.bf16.mxu0 0
    %177 = vmatpush1.bf16.msra.mxu0 0
    %178 = vmatprep.mubr.bf16.mxu0 0
    %179 = vmatmul.mubr.bf16.gmra.mrb[0].mxu0 %v80
    %v180 = vpop.f32.mrb[0].mxu0
    %v181 = vadd.f32 0.0, %v180
    %v182 = vpop.f32.mrb[0].mxu0
    %v183 = vpop.f32.mrb[0].mxu0
    %v184 = vadd.f32 0.0, %v183
    %v185 = vpop.f32.mrb[0].mxu0
    %186 = vmatprep.mubr.bf16.mxu0 0
    %187 = vmatmul.mubr.bf16.gmra.mrb[0].mxu0 %v81
    %v188 = vpop.f32.mrb[0].mxu0
    %v189 = vadd.f32 0.0, %v188
    %v190 = vpop.f32.mrb[0].mxu0
    %v191 = vpop.f32.mrb[0].mxu0
    %v192 = vadd.f32 0.0, %v191
    %v193 = vpop.f32.mrb[0].mxu0
    %194 = vdwg.mxu0
    %v195 = vcvt.f32.s32.to.zero.pseudo %v181
    %v196 = vcvt.f32.s32.to.zero.pseudo %v184
    %v197 = vcvt.f32.s32.to.zero.pseudo %v189
    %v198 = vcvt.f32.s32.to.zero.pseudo %v192
    %v199 = vsub.s32 %v195, 1
    %v200 = vsub.s32 %v196, 1
    %v201 = vsub.s32 %v197, 1
    %v202 = vsub.s32 %v198, 1
    %v203 = vsel %vm44, %v199, 4294967295
    %v204 = vsel %vm45, %v200, 4294967295
    %v205 = vsel %vm46, %v201, 4294967295
    %v206 = vsel %vm47, %v202, 4294967295
    %v207 = vpack.c.b16 %v204, %v203
    %v208 = vpack.c.b16 %v206, %v205
    %v209 = vpack.c.b8 %v208, %v207
    %210 = vst [vmem:[#allocation7] sm:$0xff] %v209
    // Predicated region
    $region18: #{_tokenize_pallas.1} parent=1 // pred_check
      _
    $region19: #{_tokenize_pallas.1} parent=1 // pred_check_branch
      %212 = sbr.rel (0) target = $region21
    $region20: #{_tokenize_pallas.1} parent=1 // pred_region
      %s214 = ssub.s32 128, 128
      %215 = vsyncadd [#allocation4], %s214
      %s217 = sshll.u32 [#allocation7], 4
      %s218 = int_to_ptr.vmem [resolvable:$true] %s217
      %220 = dma.vmem_to_hbm [thread:$0]  %s218, 128, %s2, [#allocation4]
    $region21: #{_tokenize_pallas.1} parent=1 // pred_fallthru
      _
    // Predicated region
    $region22: #{_tokenize_pallas.1} parent=1 // pred_check
      _
    $region23: #{_tokenize_pallas.1} parent=1 // pred_check_branch
      %222 = sbr.rel (0) target = $region25
    $region24: #{_tokenize_pallas.1} parent=1 // pred_region
      %223 = dma.done [#allocation4], 128
    $region25: #{_tokenize_pallas.1} parent=1 // pred_fallthru
      _
    %224 = vsyncpa [#allocation3], 1
    %225 = vsyncpa [#allocation6], 1
    %226 = vsyncpa [#allocation4], 1

</llo_original>
